<compile_context>
chip_gen: v7x
topology: tpu7x:2x2x1
jax: 0.10.0
libtpu: 0.0.40
codegen_flags: <defaults>
</compile_context>

<pallas_src>
import numpy as np

import jax
import jax.numpy as jnp
from jax import lax
from jax.experimental import pallas as pl
from jax.experimental.pallas import tpu as pltpu


def _im2row_banded_weights(w_hwio, W, pad, G, dtype):
    """Fold the dy + dx taps + width zero-padding of a KxK conv into a single
    (K*G*W*Cin, G*W*Cout) matrix, block-diagonal over the G lane-packed images.

    contraction index = dy*(G*W*Cin) + g*W*Cin + col*Cin + ci   (col = input width)
    output index      = g*W*Cout + w*Cout + co                  (w   = output width)
    with col = w + dx - pad; taps falling into the width zero-pad are dropped.
    """
    K, _, Cin, Cout = w_hwio.shape
    w_np = np.asarray(w_hwio, np.float32)
    Lin_1, Lout_1 = W * Cin, W * Cout
    t = np.zeros((K, Lin_1, Lout_1), np.float32)
    for dy in range(K):
        for dx in range(K):
            for w in range(W):
                col = w + dx - pad
                if 0 <= col < W:
                    t[dy, col * Cin:(col + 1) * Cin,
                      w * Cout:(w + 1) * Cout] = w_np[dy, dx]
    tg = np.zeros((K, G * Lin_1, G * Lout_1), np.float32)
    for g in range(G):
        tg[:, g * Lin_1:(g + 1) * Lin_1, g * Lout_1:(g + 1) * Lout_1] = t
    return jnp.asarray(tg.reshape(K * G * Lin_1, G * Lout_1), dtype)


def _choose_tiling(N, H, W, Cout, lane_pack=None, batch_tile=None):
    # G: lane packing so the matmul output lane width G*W*Cout is a multiple of 128
    if lane_pack is None:
        g = 1
        while (g * W * Cout) % 128 != 0 and g <= 128:
            g += 1
        if (g * W * Cout) % 128 != 0 or N % g != 0:
            g = 1  # fall back: still correct, but stores will be lane-masked
    else:
        g = lane_pack
    assert N % g == 0, "N must be divisible by the lane-packing factor"
    nb = N // g
    if batch_tile is None:
        # B: fill the MXU M dimension (~256 rows per step) with a divisor of nb.
        b = max(1, min(nb, 256 // max(H, 1)))
        while nb % b != 0:
            b -= 1
        # TODO(synk): on v7x prefer >= 4 grid steps per chip once N is large enough
        # that B*H >= 128 still holds after splitting (pipeline overlap per core).
    else:
        b = batch_tile
    assert nb % b == 0, "batch tile must divide N // lane_pack"
    return g, b


def _make_kernel(B, H, Lin, Lout, K, pad):
    def im2row(dst_ref, src_bf, base, L):
        # Scatter the K dy-shifted copies of one (H, L) bf16 image into the im2row
        # scratch rows [base, base+H), lane block [dy*L, (dy+1)*L).  The halo rows
        # are re-zeroed every step (megacore-safe: scratch is per-TensorCore).
        for dy in range(K):
            off = dy - pad
            lo = max(0, -off)          # first written destination row
            n = H - abs(off)           # number of copied rows
            cols = pl.ds(dy * L, L)    # lane block, 128-aligned when L % 128 == 0
            if lo > 0:
                dst_ref[pl.ds(base, lo), cols] = jnp.zeros((lo, L), jnp.bfloat16)
            hi = lo + n
            if hi < H:
                dst_ref[pl.ds(base + hi, H - hi), cols] = (
                    jnp.zeros((H - hi, L), jnp.bfloat16))
            dst_ref[pl.ds(base + lo, n), cols] = src_bf[max(0, off):max(0, off) + n, :]

    def kernel(x_ref, t1_ref, t2_ref, sb1_ref, sb2_ref, out_ref, r1_ref, r2_ref):
        # x_ref  : (B, H, Lin)      f32   lane-packed input block (also the residual)
        # t1_ref : (K*Lin, Lout)    bf16  im2row banded block-diagonal conv1 weights
        # t2_ref : (K*Lout, Lout)   bf16  conv2 weights
        # sb*_ref: (2, Lout)        f32   row 0 = BN scale, row 1 = BN bias (folded)
        # out_ref: (B, H, Lout)     f32
        # r1_ref : (B*H, K*Lin)     bf16  im2row scratch for conv1
        # r2_ref : (B*H, K*Lout)    bf16  im2row scratch for conv2

        x_f32 = x_ref[...]                         # (B, H, Lin); exact f32 residual
        x_bf = x_f32.astype(jnp.bfloat16)          # cast ONCE for the MXU operands

        # ---- im2row(x): scatter dy-shifted rows into the contraction lane blocks ----
        for b in range(B):
            im2row(r1_ref, x_bf[b], b * H, Lin)

        # ---- conv1: ONE MXU matmul (M=B*H, K-dim=K*Lin, N=Lout), f32 accumulate ----
        a1 = jnp.dot(r1_ref[...], t1_ref[...], preferred_element_type=jnp.float32)

        # ---- BN1 (folded scale/bias) + ReLU, f32 ----
        y1 = jnp.maximum(a1 * sb1_ref[0:1, :] + sb1_ref[1:2, :], 0.0)   # (B*H, Lout)
        y1_bf = y1.astype(jnp.bfloat16)

        # ---- im2row(y1) ----
        for b in range(B):
            im2row(r2_ref, y1_bf[b * H:(b + 1) * H, :], b * H, Lout)

        # ---- conv2: ONE MXU matmul ----
        a2 = jnp.dot(r2_ref[...], t2_ref[...], preferred_element_type=jnp.float32)

        # ---- BN2 + residual add + ReLU, f32 (residual is the exact f32 input) ----
        res = x_f32.reshape(B * H, Lin)            # Lin == Lout (in_c == out_c)
        y2 = jnp.maximum(a2 * sb2_ref[0:1, :] + sb2_ref[1:2, :] + res, 0.0)
        out_ref[...] = y2.reshape(B, H, Lout).astype(out_ref.dtype)

    return kernel


def residual_layer_2d_v1(x_nchw, w1_hwio, w2_hwio, scale1, bias1, scale2, bias2,
                         ksz=3, lane_pack=None, batch_tile=None):
    """x_nchw: (N, C, H, W) float32.  Returns NCHW output (matches PyTorch)."""
    N, Cin, H, W = x_nchw.shape
    K = ksz
    pad = (K - 1) // 2
    Cout = w1_hwio.shape[-1]
    assert Cin == Cout, "downsample=None requires in_c == out_c"

    G, B = _choose_tiling(N, H, W, Cout, lane_pack, batch_tile)
    NB = N // G
    Lin, Lout = G * W * Cin, G * W * Cout
    steps = NB // B

    # NCHW -> lane-packed (NB, H, G*W*C): G consecutive images side by side on lanes.
    x_nhwc = jnp.transpose(x_nchw, (0, 2, 3, 1)).astype(jnp.float32)
    x_m = (x_nhwc.reshape(NB, G, H, W * Cin)
           .transpose(0, 2, 1, 3)
           .reshape(NB, H, Lin))

    # im2row banded, block-diagonal bf16 conv weights (dy + dx taps + W-pad folded).
    t1 = _im2row_banded_weights(w1_hwio, W, pad, G, jnp.bfloat16)
    t2 = _im2row_banded_weights(w2_hwio, W, pad, G, jnp.bfloat16)

    # Folded BN scale/bias, tiled over (g, w) so they broadcast along the lane axis.
    sb1 = jnp.stack([jnp.tile(scale1, G * W), jnp.tile(bias1, G * W)]).astype(jnp.float32)
    sb2 = jnp.stack([jnp.tile(scale2, G * W), jnp.tile(bias2, G * W)]).astype(jnp.float32)

    kernel = _make_kernel(B, H, Lin, Lout, K, pad)

    out_m = pl.pallas_call(
        kernel,
        out_shape=jax.ShapeDtypeStruct((NB, H, Lout), jnp.float32),
        grid_spec=pltpu.PrefetchScalarGridSpec(
            num_scalar_prefetch=0,
            grid=(steps,),
            in_specs=[
                pl.BlockSpec((B, H, Lin), lambda n: (n, 0, 0)),
                pl.BlockSpec((K * Lin, Lout), lambda n: (0, 0)),    # VMEM-resident
                pl.BlockSpec((K * Lout, Lout), lambda n: (0, 0)),   # VMEM-resident
                pl.BlockSpec((2, Lout), lambda n: (0, 0)),
                pl.BlockSpec((2, Lout), lambda n: (0, 0)),
            ],
            out_specs=pl.BlockSpec((B, H, Lout), lambda n: (n, 0, 0)),
            scratch_shapes=[
                pltpu.VMEM((B * H, K * Lin), jnp.bfloat16),   # im2row for conv1
                pltpu.VMEM((B * H, K * Lout), jnp.bfloat16),  # im2row for conv2
            ],
        ),
        compiler_params=pltpu.CompilerParams(
            dimension_semantics=("parallel",),
            vmem_limit_bytes=32 * 1024 * 1024,
        ),
    )(x_m, t1, t2, sb1, sb2)

    # Unpack lane groups back to NCHW.
    out = (out_m.reshape(NB, H, G, W, Cout)
           .transpose(0, 2, 1, 3, 4)
           .reshape(N, H, W, Cout))
    return jnp.transpose(out, (0, 3, 1, 2))


def _reference(x_nchw, w1_hwio, w2_hwio, scale1, bias1, scale2, bias2):
    """Reference with the same bf16 casting points as the kernel (f32 accumulation)."""
    dn = ('NHWC', 'HWIO', 'NHWC')
    x = jnp.transpose(x_nchw, (0, 2, 3, 1)).astype(jnp.float32)
    y = lax.conv_general_dilated(x.astype(jnp.bfloat16), w1_hwio.astype(jnp.bfloat16),
                                 (1, 1), 'SAME', dimension_numbers=dn,
                                 preferred_element_type=jnp.float32)
    y = jnp.maximum(y * scale1 + bias1, 0.0)
    y = lax.conv_general_dilated(y.astype(jnp.bfloat16), w2_hwio.astype(jnp.bfloat16),
                                 (1, 1), 'SAME', dimension_numbers=dn,
                                 preferred_element_type=jnp.float32)
    y = jnp.maximum(y * scale2 + bias2 + x, 0.0)
    return jnp.transpose(y, (0, 3, 1, 2))


if __name__ == "__main__":
    key = jax.random.PRNGKey(0)
    C, H, W, K = 4, 16, 16, 3   # in_c == out_c == 4 (downsample=None)
    k_x, k_w1, k_w2 = jax.random.split(key, 3)

    # Conv weights (HWIO layout; PyTorch stores OIHW -- same values, just a transpose)
    w1 = jax.random.normal(k_w1, (K, K, C, C), jnp.float32) * 0.2
    w2 = jax.random.normal(k_w2, (K, K, C, C), jnp.float32) * 0.2

    # Deterministic BatchNorm2d (inference semantics) parameters, folded:
    eps = 1e-5
    gamma1 = jnp.linspace(0.8, 1.2, C)
    beta1 = jnp.linspace(-0.1, 0.1, C)
    mean1 = jnp.linspace(-0.2, 0.2, C)
    var1 = jnp.linspace(0.5, 1.5, C)
    gamma2 = jnp.linspace(1.1, 0.9, C)
    beta2 = jnp.linspace(0.05, -0.05, C)
    mean2 = jnp.linspace(0.1, -0.1, C)
    var2 = jnp.linspace(1.2, 0.8, C)
    scale1 = gamma1 / jnp.sqrt(var1 + eps)
    bias1 = beta1 - mean1 * scale1
    scale2 = gamma2 / jnp.sqrt(var2 + eps)
    bias2 = beta2 - mean2 * scale2

    # Config 1: canonical small batch (auto tiling: G=2 lane-packed, 1 grid step).
    x2 = jax.random.normal(k_x, (2, C, H, W), jnp.float32)
    out2 = jax.block_until_ready(
        residual_layer_2d_v1(x2, w1, w2, scale1, bias1, scale2, bias2, ksz=K))
    ref2 = _reference(x2, w1, w2, scale1, bias1, scale2, bias2)
    assert out2.shape == (2, C, H, W)
    assert jnp.allclose(out2, ref2, atol=1e-2, rtol=1e-2), "mismatch vs reference (N=2)"

    # Config 2: exercises batch-tiled M (B=2 lane-groups per step) and a 2-step grid.
    x8 = jax.random.normal(k_x, (8, C, H, W), jnp.float32)
    out8 = jax.block_until_ready(
        residual_layer_2d_v1(x8, w1, w2, scale1, bias1, scale2, bias2, ksz=K,
                             batch_tile=2))
    ref8 = _reference(x8, w1, w2, scale1, bias1, scale2, bias2)
    assert out8.shape == (8, C, H, W)
    assert jnp.allclose(out8, ref8, atol=1e-2, rtol=1e-2), "mismatch vs reference (N=8)"

    print("KERNEL_OK")
</pallas_src>

<mosaic_0001>
module attributes {stable_mosaic.version = 11 : i64} {
  func.func @kernel(%arg0: i32, %arg1: memref<1x16x128xf32, #tpu.memory_space<vmem>>, %arg2: memref<384x128xbf16, #tpu.memory_space<vmem>>, %arg3: memref<384x128xbf16, #tpu.memory_space<vmem>>, %arg4: memref<2x128xf32, #tpu.memory_space<vmem>>, %arg5: memref<2x128xf32, #tpu.memory_space<vmem>>, %arg6: memref<1x16x128xf32, #tpu.memory_space<vmem>>, %arg7: memref<16x384xbf16, #tpu.memory_space<vmem>>, %arg8: memref<16x384xbf16, #tpu.memory_space<vmem>>) attributes {dimension_semantics = [#tpu.dimension_semantics<parallel>], iteration_bounds = array<i64: 1>, scalar_prefetch = 0 : i64, scratch_operands = 2 : i64, tpu.core_type = #tpu.core_type<tc>, window_params = [{transform_indices = @transform_0, window_bounds = array<i64: 1, 16, 128>}, {pipeline_mode = #tpu.pipeline_mode<synchronous>, transform_indices = @transform_1, window_bounds = array<i64: 384, 128>}, {pipeline_mode = #tpu.pipeline_mode<synchronous>, transform_indices = @transform_2, window_bounds = array<i64: 384, 128>}, {pipeline_mode = #tpu.pipeline_mode<synchronous>, transform_indices = @transform_3, window_bounds = array<i64: 2, 128>}, {pipeline_mode = #tpu.pipeline_mode<synchronous>, transform_indices = @transform_4, window_bounds = array<i64: 2, 128>}, {transform_indices = @transform_5, window_bounds = array<i64: 1, 16, 128>}]} {
    %c0 = arith.constant 0 : index
    %c0_0 = arith.constant 0 : index
    %c0_1 = arith.constant 0 : index
    %0 = vector.load %arg1[%c0, %c0_0, %c0_1] : memref<1x16x128xf32, #tpu.memory_space<vmem>>, vector<1x16x128xf32>
    %1 = arith.truncf %0 : vector<1x16x128xf32> to vector<1x16x128xbf16>
    %2 = vector.shape_cast %1 : vector<1x16x128xbf16> to vector<16x128xbf16>
    %cst = arith.constant 0.000000e+00 : bf16
    %3 = vector.broadcast %cst : bf16 to vector<1x128xbf16>
    %c0_2 = arith.constant 0 : index
    %c0_3 = arith.constant 0 : index
    %4 = vector.load %arg7[%c0_2, %c0_3] : memref<16x384xbf16, #tpu.memory_space<vmem>>, vector<1x128xbf16>
    tpu.vector_store %arg7[%c0_2, %c0_3], %3 {strides = array<i32>} : memref<16x384xbf16, #tpu.memory_space<vmem>>, vector<1x128xbf16>,
    %5 = vector.extract_strided_slice %2 {offsets = [0, 0], sizes = [15, 128], strides = [1, 1]} : vector<16x128xbf16> to vector<15x128xbf16>
    %c1 = arith.constant 1 : index
    %c0_4 = arith.constant 0 : index
    %6 = vector.load %arg7[%c1, %c0_4] : memref<16x384xbf16, #tpu.memory_space<vmem>>, vector<15x128xbf16>
    tpu.vector_store %arg7[%c1, %c0_4], %5 {strides = array<i32>} : memref<16x384xbf16, #tpu.memory_space<vmem>>, vector<15x128xbf16>,
    %c0_5 = arith.constant 0 : index
    %c128 = arith.constant 128 : index
    %7 = vector.load %arg7[%c0_5, %c128] : memref<16x384xbf16, #tpu.memory_space<vmem>>, vector<16x128xbf16>
    tpu.vector_store %arg7[%c0_5, %c128], %2 {strides = array<i32>} : memref<16x384xbf16, #tpu.memory_space<vmem>>, vector<16x128xbf16>,
    %cst_6 = arith.constant 0.000000e+00 : bf16
    %8 = vector.broadcast %cst_6 : bf16 to vector<1x128xbf16>
    %c15 = arith.constant 15 : index
    %c256 = arith.constant 256 : index
    %9 = vector.load %arg7[%c15, %c256] : memref<16x384xbf16, #tpu.memory_space<vmem>>, vector<1x128xbf16>
    tpu.vector_store %arg7[%c15, %c256], %8 {strides = array<i32>} : memref<16x384xbf16, #tpu.memory_space<vmem>>, vector<1x128xbf16>,
    %10 = vector.extract_strided_slice %2 {offsets = [1, 0], sizes = [15, 128], strides = [1, 1]} : vector<16x128xbf16> to vector<15x128xbf16>
    %c0_7 = arith.constant 0 : index
    %c256_8 = arith.constant 256 : index
    %11 = vector.load %arg7[%c0_7, %c256_8] : memref<16x384xbf16, #tpu.memory_space<vmem>>, vector<15x128xbf16>
    tpu.vector_store %arg7[%c0_7, %c256_8], %10 {strides = array<i32>} : memref<16x384xbf16, #tpu.memory_space<vmem>>, vector<15x128xbf16>,
    %c0_9 = arith.constant 0 : index
    %c0_10 = arith.constant 0 : index
    %12 = vector.load %arg7[%c0_9, %c0_10] : memref<16x384xbf16, #tpu.memory_space<vmem>>, vector<16x384xbf16>
    %c0_11 = arith.constant 0 : index
    %c0_12 = arith.constant 0 : index
    %13 = vector.load %arg2[%c0_11, %c0_12] : memref<384x128xbf16, #tpu.memory_space<vmem>>, vector<384x128xbf16>
    %cst_13 = arith.constant dense<0.000000e+00> : vector<16x128xf32>
    %14 = tpu.matmul %12, %13, %cst_13 {dimension_numbers = #tpu.dot_dimension_numbers<[1], [0], [0], [1], [0, 0, 1, 1], [], []>} : vector<16x384xbf16>, vector<384x128xbf16>, vector<16x128xf32> -> vector<16x128xf32>
    %c0_14 = arith.constant 0 : index
    %c0_15 = arith.constant 0 : index
    %15 = vector.load %arg4[%c0_14, %c0_15] : memref<2x128xf32, #tpu.memory_space<vmem>>, vector<1x128xf32>
    %16 = vector.broadcast %15 : vector<1x128xf32> to vector<16x128xf32>
    %17 = arith.mulf %14, %16 : vector<16x128xf32>
    %c1_16 = arith.constant 1 : index
    %c0_17 = arith.constant 0 : index
    %18 = vector.load %arg4[%c1_16, %c0_17] : memref<2x128xf32, #tpu.memory_space<vmem>>, vector<1x128xf32>
    %19 = vector.broadcast %18 : vector<1x128xf32> to vector<16x128xf32>
    %20 = arith.addf %17, %19 : vector<16x128xf32>
    %cst_18 = arith.constant 0.000000e+00 : f32
    %21 = vector.broadcast %cst_18 : f32 to vector<16x128xf32>
    %22 = arith.maximumf %20, %21 : vector<16x128xf32>
    %23 = arith.truncf %22 : vector<16x128xf32> to vector<16x128xbf16>
    %cst_19 = arith.constant 0.000000e+00 : bf16
    %24 = vector.broadcast %cst_19 : bf16 to vector<1x128xbf16>
    %c0_20 = arith.constant 0 : index
    %c0_21 = arith.constant 0 : index
    %25 = vector.load %arg8[%c0_20, %c0_21] : memref<16x384xbf16, #tpu.memory_space<vmem>>, vector<1x128xbf16>
    tpu.vector_store %arg8[%c0_20, %c0_21], %24 {strides = array<i32>} : memref<16x384xbf16, #tpu.memory_space<vmem>>, vector<1x128xbf16>,
    %26 = vector.extract_strided_slice %23 {offsets = [0, 0], sizes = [15, 128], strides = [1, 1]} : vector<16x128xbf16> to vector<15x128xbf16>
    %c1_22 = arith.constant 1 : index
    %c0_23 = arith.constant 0 : index
    %27 = vector.load %arg8[%c1_22, %c0_23] : memref<16x384xbf16, #tpu.memory_space<vmem>>, vector<15x128xbf16>
    tpu.vector_store %arg8[%c1_22, %c0_23], %26 {strides = array<i32>} : memref<16x384xbf16, #tpu.memory_space<vmem>>, vector<15x128xbf16>,
    %c0_24 = arith.constant 0 : index
    %c128_25 = arith.constant 128 : index
    %28 = vector.load %arg8[%c0_24, %c128_25] : memref<16x384xbf16, #tpu.memory_space<vmem>>, vector<16x128xbf16>
    tpu.vector_store %arg8[%c0_24, %c128_25], %23 {strides = array<i32>} : memref<16x384xbf16, #tpu.memory_space<vmem>>, vector<16x128xbf16>,
    %cst_26 = arith.constant 0.000000e+00 : bf16
    %29 = vector.broadcast %cst_26 : bf16 to vector<1x128xbf16>
    %c15_27 = arith.constant 15 : index
    %c256_28 = arith.constant 256 : index
    %30 = vector.load %arg8[%c15_27, %c256_28] : memref<16x384xbf16, #tpu.memory_space<vmem>>, vector<1x128xbf16>
    tpu.vector_store %arg8[%c15_27, %c256_28], %29 {strides = array<i32>} : memref<16x384xbf16, #tpu.memory_space<vmem>>, vector<1x128xbf16>,
    %31 = vector.extract_strided_slice %23 {offsets = [1, 0], sizes = [15, 128], strides = [1, 1]} : vector<16x128xbf16> to vector<15x128xbf16>
    %c0_29 = arith.constant 0 : index
    %c256_30 = arith.constant 256 : index
    %32 = vector.load %arg8[%c0_29, %c256_30] : memref<16x384xbf16, #tpu.memory_space<vmem>>, vector<15x128xbf16>
    tpu.vector_store %arg8[%c0_29, %c256_30], %31 {strides = array<i32>} : memref<16x384xbf16, #tpu.memory_space<vmem>>, vector<15x128xbf16>,
    %c0_31 = arith.constant 0 : index
    %c0_32 = arith.constant 0 : index
    %33 = vector.load %arg8[%c0_31, %c0_32] : memref<16x384xbf16, #tpu.memory_space<vmem>>, vector<16x384xbf16>
    %c0_33 = arith.constant 0 : index
    %c0_34 = arith.constant 0 : index
    %34 = vector.load %arg3[%c0_33, %c0_34] : memref<384x128xbf16, #tpu.memory_space<vmem>>, vector<384x128xbf16>
    %cst_35 = arith.constant dense<0.000000e+00> : vector<16x128xf32>
    %35 = tpu.matmul %33, %34, %cst_35 {dimension_numbers = #tpu.dot_dimension_numbers<[1], [0], [0], [1], [0, 0, 1, 1], [], []>} : vector<16x384xbf16>, vector<384x128xbf16>, vector<16x128xf32> -> vector<16x128xf32>
    %36 = vector.shape_cast %0 : vector<1x16x128xf32> to vector<16x128xf32>
    %c0_36 = arith.constant 0 : index
    %c0_37 = arith.constant 0 : index
    %37 = vector.load %arg5[%c0_36, %c0_37] : memref<2x128xf32, #tpu.memory_space<vmem>>, vector<1x128xf32>
    %38 = vector.broadcast %37 : vector<1x128xf32> to vector<16x128xf32>
    %39 = arith.mulf %35, %38 : vector<16x128xf32>
    %c1_38 = arith.constant 1 : index
    %c0_39 = arith.constant 0 : index
    %40 = vector.load %arg5[%c1_38, %c0_39] : memref<2x128xf32, #tpu.memory_space<vmem>>, vector<1x128xf32>
    %41 = vector.broadcast %40 : vector<1x128xf32> to vector<16x128xf32>
    %42 = arith.addf %39, %41 : vector<16x128xf32>
    %43 = arith.addf %42, %36 : vector<16x128xf32>
    %cst_40 = arith.constant 0.000000e+00 : f32
    %44 = vector.broadcast %cst_40 : f32 to vector<16x128xf32>
    %45 = arith.maximumf %43, %44 : vector<16x128xf32>
    %46 = vector.shape_cast %45 : vector<16x128xf32> to vector<1x16x128xf32>
    %c0_41 = arith.constant 0 : index
    %c0_42 = arith.constant 0 : index
    %c0_43 = arith.constant 0 : index
    %47 = vector.load %arg6[%c0_41, %c0_42, %c0_43] : memref<1x16x128xf32, #tpu.memory_space<vmem>>, vector<1x16x128xf32>
    tpu.vector_store %arg6[%c0_41, %c0_42, %c0_43], %46 {strides = array<i32>} : memref<1x16x128xf32, #tpu.memory_space<vmem>>, vector<1x16x128xf32>,
    return
  }
  func.func @transform_0(%arg0: i32) -> (i32, i32, i32) {
    %c0_i32 = arith.constant 0 : i32
    %c0_i32_0 = arith.constant 0 : i32
    %c0_i32_1 = arith.constant 0 : i32
    return %arg0, %c0_i32, %c0_i32_0 : i32, i32, i32
  }
  func.func @transform_1(%arg0: i32) -> (i32, i32) {
    %c0_i32 = arith.constant 0 : i32
    %c0_i32_0 = arith.constant 0 : i32
    %c0_i32_1 = arith.constant 0 : i32
    return %c0_i32, %c0_i32_0 : i32, i32
  }
  func.func @transform_2(%arg0: i32) -> (i32, i32) {
    %c0_i32 = arith.constant 0 : i32
    %c0_i32_0 = arith.constant 0 : i32
    %c0_i32_1 = arith.constant 0 : i32
    return %c0_i32, %c0_i32_0 : i32, i32
  }
  func.func @transform_3(%arg0: i32) -> (i32, i32) {
    %c0_i32 = arith.constant 0 : i32
    %c0_i32_0 = arith.constant 0 : i32
    %c0_i32_1 = arith.constant 0 : i32
    return %c0_i32, %c0_i32_0 : i32, i32
  }
  func.func @transform_4(%arg0: i32) -> (i32, i32) {
    %c0_i32 = arith.constant 0 : i32
    %c0_i32_0 = arith.constant 0 : i32
    %c0_i32_1 = arith.constant 0 : i32
    return %c0_i32, %c0_i32_0 : i32, i32
  }
  func.func @transform_5(%arg0: i32) -> (i32, i32, i32) {
    %c0_i32 = arith.constant 0 : i32
    %c0_i32_0 = arith.constant 0 : i32
    %c0_i32_1 = arith.constant 0 : i32
    return %arg0, %c0_i32, %c0_i32_0 : i32, i32, i32
  }
}

</mosaic_0001>

<llo_original>
// kernel: tpu_custom_call.1
$region0: #{tpu_custom_call.1}
  #allocation0 [shape = 'u32[]', space=smem, size = 0x4, offset = 0x4, fixed_abs, tag = 'smem constant byte address 0x4 - core index']
  #allocation1 [shape = 'u32[144,128]{1,0:T(1,128)}', space=vmem, size = 0x12000, scoped, tag = 'internal scratch']
  #allocation2 [shape = 'bf16[16,384]{1,0:T(16,128)(2,1)}', space=vmem, size = 0x3000, scoped, tag = 'scratch operand']
  #allocation3 [shape = 'bf16[16,384]{1,0:T(16,128)(2,1)}', space=vmem, size = 0x3000, scoped, tag = 'scratch operand']
  %s0 = inlined_call_operand.hbm [shape: f32[1,16,128], index: 0, kind: input, shape index: {}]
  %s1 = inlined_call_operand.hbm [shape: bf16[384,128], index: 1, kind: input, shape index: {}]
  %s2 = inlined_call_operand.hbm [shape: bf16[384,128], index: 2, kind: input, shape index: {}]
  %s3 = inlined_call_operand.vmem [shape: f32[2,128], index: 3, kind: input, shape index: {}]
  %s4 = inlined_call_operand.vmem [shape: f32[2,128], index: 4, kind: input, shape index: {}]
  %s5 = inlined_call_operand.hbm [shape: f32[1,16,128], index: 5, kind: output, shape index: {}]
  %s6 = sld [smem:[#allocation0]]
  $region42: #{tpu_custom_call.1} parent=0
    _
  %s8 = ssub.s32 1, %s6
  %s9 = scalar_select 0, %s8, %s6
  $region1: #{tpu_custom_call.1} parent=0
    #allocation4 [shape = 'u8[8192]{0}', space=vmem, size = 0x2000, scoped, tag = 'input window, operand 0, single buffered']
    #allocation5 [shape = 's32[1]{0}', space=sflag, size = 0x4, scoped, tag = 'scoped memory for tpu_custom_call.1']
    #allocation6 [shape = 's32[1]{0}', space=sflag, size = 0x4, scoped, tag = 'scoped memory for tpu_custom_call.1']
    #allocation7 [shape = 'u8[98304]{0}', space=vmem, size = 0x18000, scoped, tag = 'input window, operand 1, single buffered']
    #allocation8 [shape = 's32[1]{0}', space=sflag, size = 0x4, scoped, tag = 'scoped memory for tpu_custom_call.1']
    #allocation9 [shape = 'u8[98304]{0}', space=vmem, size = 0x18000, scoped, tag = 'input window, operand 2, single buffered']
    #allocation10 [shape = 'u8[8192]{0}', space=vmem, size = 0x2000, scoped, tag = 'output window, operand 0, single buffered']
    %10 = vsyncpa [#allocation5], 0
    %11 = vsyncpa [#allocation8], 0
    %12 = vsyncpa [#allocation6], 0
    // Predicated region
    $region2: #{tpu_custom_call.1} parent=1 // pred_check
      _
    $region3: #{tpu_custom_call.1} parent=1 // pred_check_branch
      %14 = sbr.rel (0) target = $region5
    $region4: #{tpu_custom_call.1} parent=1 // pred_region
      %s16 = ssub.s32 256, 256
      %17 = vsyncadd [#allocation5], %s16
      %s18 = sshll.u32 [#allocation4], 4
      %s19 = int_to_ptr.vmem [resolvable:$true] %s18
      %24 = dma.hbm_to_vmem [thread:$0]  %s0, 256, %s19, [#allocation5], 128, 128, 8
    $region5: #{tpu_custom_call.1} parent=1 // pred_fallthru
      _
    // Predicated region
    $region6: #{tpu_custom_call.1} parent=1 // pred_check
      _
    $region7: #{tpu_custom_call.1} parent=1 // pred_check_branch
      %26 = sbr.rel (0) target = $region9
    $region8: #{tpu_custom_call.1} parent=1 // pred_region
      %s28 = ssub.s32 3072, 3072
      %29 = vsyncadd [#allocation8], %s28
      %s30 = sshll.u32 [#allocation7], 4
      %s31 = int_to_ptr.vmem [resolvable:$true] %s30
      %36 = dma.hbm_to_vmem [thread:$0]  %s1, 3072, %s31, [#allocation8], 64, 64, 4
    $region9: #{tpu_custom_call.1} parent=1 // pred_fallthru
      _
    // Predicated region
    $region10: #{tpu_custom_call.1} parent=1 // pred_check
      _
    $region11: #{tpu_custom_call.1} parent=1 // pred_check_branch
      %38 = sbr.rel (0) target = $region13
    $region12: #{tpu_custom_call.1} parent=1 // pred_region
      %s40 = ssub.s32 3072, 3072
      %41 = vsyncadd [#allocation8], %s40
      %s42 = sshll.u32 [#allocation9], 4
      %s43 = int_to_ptr.vmem [resolvable:$true] %s42
      %48 = dma.hbm_to_vmem [thread:$0]  %s2, 3072, %s43, [#allocation8], 64, 64, 4
    $region13: #{tpu_custom_call.1} parent=1 // pred_fallthru
      _
    // Predicated region
    $region14: #{tpu_custom_call.1} parent=1 // pred_check
      _
    $region15: #{tpu_custom_call.1} parent=1 // pred_check_branch
      %50 = sbr.rel (0) target = $region17
    $region16: #{tpu_custom_call.1} parent=1 // pred_region
      _
    $region17: #{tpu_custom_call.1} parent=1 // pred_fallthru
      _
    // Predicated region
    $region18: #{tpu_custom_call.1} parent=1 // pred_check
      _
    $region19: #{tpu_custom_call.1} parent=1 // pred_check_branch
      %52 = sbr.rel (0) target = $region21
    $region20: #{tpu_custom_call.1} parent=1 // pred_region
      _
    $region21: #{tpu_custom_call.1} parent=1 // pred_fallthru
      _
    // Predicated region
    $region22: #{tpu_custom_call.1} parent=1 // pred_check
      _
    $region23: #{tpu_custom_call.1} parent=1 // pred_check_branch
      %54 = sbr.rel (0) target = $region25
    $region24: #{tpu_custom_call.1} parent=1 // pred_region
      %55 = dma.done [#allocation5], 256
    $region25: #{tpu_custom_call.1} parent=1 // pred_fallthru
      _
    // Predicated region
    $region26: #{tpu_custom_call.1} parent=1 // pred_check
      _
    $region27: #{tpu_custom_call.1} parent=1 // pred_check_branch
      %57 = sbr.rel (0) target = $region29
    $region28: #{tpu_custom_call.1} parent=1 // pred_region
      %58 = dma.done [#allocation8], 3072
    $region29: #{tpu_custom_call.1} parent=1 // pred_fallthru
      _
    // Predicated region
    $region30: #{tpu_custom_call.1} parent=1 // pred_check
      _
    $region31: #{tpu_custom_call.1} parent=1 // pred_check_branch
      %60 = sbr.rel (0) target = $region33
    $region32: #{tpu_custom_call.1} parent=1 // pred_region
      %61 = dma.done [#allocation8], 3072
    $region33: #{tpu_custom_call.1} parent=1 // pred_fallthru
      _
    %v63 = vld [vmem:[#allocation4] sm:$0xff]
    %v64 = vld [vmem:[#allocation4 + $0x8] sm:$0xff]
    %v65 = vpack.c.bf16 %v64, %v63
    %vm66 = vcmask 1040384
    %vm67 = vsmask.f32 256
    %vm68 = vmand %vm66, %vm67
    %v69 = vld [vmem:[#allocation2] sm:$0x1]
    %v70 = vsel %vm68, 0, %v69
    %71 = vst [vmem:[#allocation2] sm:$0x1] %v70
    %v73 = vshrl.u32 %v65, 16
    %v75 = vrot.slane %v73, 7
    %v76 = vshll.u32 %v65, 16
    %v78 = vor.u32 %v75, %v76
    %vm80 = vcmask 1047552
    %vm81 = vsmask.f32 7938
    %vm82 = vmand %vm80, %vm81
    %v83 = vld [vmem:[#allocation2] sm:$0xff]
    %v84 = vsel %vm82, %v78, %v83
    %85 = vst [vmem:[#allocation2] sm:$0xff] %v84
    %86 = vst [vmem:[#allocation2 + $0x8] sm:$0xff] %v65
    %vm87 = vcmask 1047559
    %vm88 = vsmask.f32 7966
    %vm89 = vmand %vm87, %vm88
    %v90 = vld [vmem:[#allocation2 + $0x10] sm:$0x80]
    %v91 = vsel %vm89, 0, %v90
    %92 = vst [vmem:[#allocation2 + $0x10] sm:$0x80] %v91
    %v93 = vrot.slane %v76, 1
    %v94 = vor.u32 %v73, %v93
    %vm96 = vsmask.f32 7424
    %vm97 = vmand %vm80, %vm96
    %v98 = vld [vmem:[#allocation2 + $0x10] sm:$0xff]
    %v99 = vsel %vm97, %v94, %v98
    %100 = vst [vmem:[#allocation2 + $0x10] sm:$0xff] %v99
    %v101 = vld [vmem:[#allocation2] sm:$0xff]
    %v102 = vld [vmem:[#allocation2 + $0x8] sm:$0xff]
    %v103 = vld [vmem:[#allocation2 + $0x10] sm:$0xff]
    %v104 = vld [vmem:[#allocation7] sm:$0xf]
    %v105 = vld [vmem:[#allocation7 + $0x4] sm:$0xf]
    %v106 = vld [vmem:[#allocation7 + $0x8] sm:$0xf]
    %v107 = vld [vmem:[#allocation7 + $0xc] sm:$0xf]
    %v108 = vld [vmem:[#allocation7 + $0x10] sm:$0xf]
    %v109 = vld [vmem:[#allocation7 + $0x14] sm:$0xf]
    %v110 = vld [vmem:[#allocation7 + $0x18] sm:$0xf]
    %v111 = vld [vmem:[#allocation7 + $0x1c] sm:$0xf]
    %v112 = vld [vmem:[#allocation7 + $0x20] sm:$0xf]
    %v113 = vld [vmem:[#allocation7 + $0x24] sm:$0xf]
    %v114 = vld [vmem:[#allocation7 + $0x28] sm:$0xf]
    %v115 = vld [vmem:[#allocation7 + $0x2c] sm:$0xf]
    %v116 = vld [vmem:[#allocation7 + $0x30] sm:$0xf]
    %v117 = vld [vmem:[#allocation7 + $0x34] sm:$0xf]
    %v118 = vld [vmem:[#allocation7 + $0x38] sm:$0xf]
    %v119 = vld [vmem:[#allocation7 + $0x3c] sm:$0xf]
    %v120 = vld [vmem:[#allocation7 + $0x40] sm:$0xf]
    %v121 = vld [vmem:[#allocation7 + $0x44] sm:$0xf]
    %v122 = vld [vmem:[#allocation7 + $0x48] sm:$0xf]
    %v123 = vld [vmem:[#allocation7 + $0x4c] sm:$0xf]
    %v124 = vld [vmem:[#allocation7 + $0x50] sm:$0xf]
    %v125 = vld [vmem:[#allocation7 + $0x54] sm:$0xf]
    %v126 = vld [vmem:[#allocation7 + $0x58] sm:$0xf]
    %v127 = vld [vmem:[#allocation7 + $0x5c] sm:$0xf]
    %v128 = vld [vmem:[#allocation7 + $0x60] sm:$0xf]
    %v129 = vld [vmem:[#allocation7 + $0x64] sm:$0xf]
    %v130 = vld [vmem:[#allocation7 + $0x68] sm:$0xf]
    %v131 = vld [vmem:[#allocation7 + $0x6c] sm:$0xf]
    %v132 = vld [vmem:[#allocation7 + $0x70] sm:$0xf]
    %v133 = vld [vmem:[#allocation7 + $0x74] sm:$0xf]
    %v134 = vld [vmem:[#allocation7 + $0x78] sm:$0xf]
    %v135 = vld [vmem:[#allocation7 + $0x7c] sm:$0xf]
    %v136 = vld [vmem:[#allocation7 + $0x80] sm:$0xf]
    %v137 = vld [vmem:[#allocation7 + $0x84] sm:$0xf]
    %v138 = vld [vmem:[#allocation7 + $0x88] sm:$0xf]
    %v139 = vld [vmem:[#allocation7 + $0x8c] sm:$0xf]
    %v140 = vld [vmem:[#allocation7 + $0x90] sm:$0xf]
    %v141 = vld [vmem:[#allocation7 + $0x94] sm:$0xf]
    %v142 = vld [vmem:[#allocation7 + $0x98] sm:$0xf]
    %v143 = vld [vmem:[#allocation7 + $0x9c] sm:$0xf]
    %v144 = vld [vmem:[#allocation7 + $0xa0] sm:$0xf]
    %v145 = vld [vmem:[#allocation7 + $0xa4] sm:$0xf]
    %v146 = vld [vmem:[#allocation7 + $0xa8] sm:$0xf]
    %v147 = vld [vmem:[#allocation7 + $0xac] sm:$0xf]
    %v148 = vld [vmem:[#allocation7 + $0xb0] sm:$0xf]
    %v149 = vld [vmem:[#allocation7 + $0xb4] sm:$0xf]
    %v150 = vld [vmem:[#allocation7 + $0xb8] sm:$0xf]
    %v151 = vld [vmem:[#allocation7 + $0xbc] sm:$0xf]
    %v200 = vunpack.c.l.b16 %v104
    %v201 = vunpack.c.l.b16 %v105
    %v202 = vunpack.c.l.b16 %v106
    %v203 = vunpack.c.l.b16 %v107
    %v204 = vunpack.c.l.b16 %v108
    %v205 = vunpack.c.l.b16 %v109
    %v206 = vunpack.c.l.b16 %v110
    %v207 = vunpack.c.l.b16 %v111
    %v208 = vunpack.c.l.b16 %v112
    %v209 = vunpack.c.l.b16 %v113
    %v210 = vunpack.c.l.b16 %v114
    %v211 = vunpack.c.l.b16 %v115
    %v212 = vunpack.c.l.b16 %v116
    %v213 = vunpack.c.l.b16 %v117
    %v214 = vunpack.c.l.b16 %v118
    %v215 = vunpack.c.l.b16 %v119
    %v216 = vunpack.c.l.b16 %v120
    %v217 = vunpack.c.l.b16 %v121
    %v218 = vunpack.c.l.b16 %v122
    %v219 = vunpack.c.l.b16 %v123
    %v220 = vunpack.c.l.b16 %v124
    %v221 = vunpack.c.l.b16 %v125
    %v222 = vunpack.c.l.b16 %v126
    %v223 = vunpack.c.l.b16 %v127
    %v224 = vunpack.c.l.b16 %v128
    %v225 = vunpack.c.l.b16 %v129
    %v226 = vunpack.c.l.b16 %v130
    %v227 = vunpack.c.l.b16 %v131
    %v228 = vunpack.c.l.b16 %v132
    %v229 = vunpack.c.l.b16 %v133
    %v230 = vunpack.c.l.b16 %v134
    %v231 = vunpack.c.l.b16 %v135
    %v232 = vunpack.c.l.b16 %v136
    %v233 = vunpack.c.l.b16 %v137
    %v234 = vunpack.c.l.b16 %v138
    %v235 = vunpack.c.l.b16 %v139
    %v236 = vunpack.c.l.b16 %v140
    %v237 = vunpack.c.l.b16 %v141
    %v238 = vunpack.c.l.b16 %v142
    %v239 = vunpack.c.l.b16 %v143
    %v240 = vunpack.c.l.b16 %v144
    %v241 = vunpack.c.l.b16 %v145
    %v242 = vunpack.c.l.b16 %v146
    %v243 = vunpack.c.l.b16 %v147
    %v244 = vunpack.c.l.b16 %v148
    %v245 = vunpack.c.l.b16 %v149
    %v246 = vunpack.c.l.b16 %v150
    %v247 = vunpack.c.l.b16 %v151
    %v248 = vpack.c.b16 %v201, %v200
    %v249 = vpack.c.b16 %v203, %v202
    %v250 = vpack.c.b16 %v205, %v204
    %v251 = vpack.c.b16 %v207, %v206
    %v252 = vpack.c.b16 %v209, %v208
    %v253 = vpack.c.b16 %v211, %v210
    %v254 = vpack.c.b16 %v213, %v212
    %v255 = vpack.c.b16 %v215, %v214
    %v256 = vpack.c.b16 %v217, %v216
    %v257 = vpack.c.b16 %v219, %v218
    %v258 = vpack.c.b16 %v221, %v220
    %v259 = vpack.c.b16 %v223, %v222
    %v260 = vpack.c.b16 %v225, %v224
    %v261 = vpack.c.b16 %v227, %v226
    %v262 = vpack.c.b16 %v229, %v228
    %v263 = vpack.c.b16 %v231, %v230
    %v264 = vpack.c.b16 %v233, %v232
    %v265 = vpack.c.b16 %v235, %v234
    %v266 = vpack.c.b16 %v237, %v236
    %v267 = vpack.c.b16 %v239, %v238
    %v268 = vpack.c.b16 %v241, %v240
    %v269 = vpack.c.b16 %v243, %v242
    %v270 = vpack.c.b16 %v245, %v244
    %v271 = vpack.c.b16 %v247, %v246
    %296 = vmatprep.subr.bf16.mxu0 0
    %297 = vmatpush1.bf16.msra.mxu0 %v248
    %298 = vmatprep.subr.bf16.mxu0 0
    %299 = vmatpush1.bf16.msra.mxu0 %v249
    %300 = vmatprep.subr.bf16.mxu0 0
    %301 = vmatpush1.bf16.msra.mxu0 %v250
    %302 = vmatprep.subr.bf16.mxu0 0
    %303 = vmatpush1.bf16.msra.mxu0 %v251
    %304 = vmatprep.subr.bf16.mxu0 0
    %305 = vmatpush1.bf16.msra.mxu0 %v252
    %306 = vmatprep.subr.bf16.mxu0 0
    %307 = vmatpush1.bf16.msra.mxu0 %v253
    %308 = vmatprep.subr.bf16.mxu0 0
    %309 = vmatpush1.bf16.msra.mxu0 %v254
    %310 = vmatprep.subr.bf16.mxu0 0
    %311 = vmatpush1.bf16.msra.mxu0 %v255
    %312 = vmatprep.subr.bf16.mxu0 0
    %313 = vmatpush1.bf16.msra.mxu0 %v256
    %314 = vmatprep.subr.bf16.mxu0 0
    %315 = vmatpush1.bf16.msra.mxu0 %v257
    %316 = vmatprep.subr.bf16.mxu0 0
    %317 = vmatpush1.bf16.msra.mxu0 %v258
    %318 = vmatprep.subr.bf16.mxu0 0
    %319 = vmatpush1.bf16.msra.mxu0 %v259
    %320 = vmatprep.subr.bf16.mxu0 0
    %321 = vmatpush1.bf16.msra.mxu0 %v260
    %322 = vmatprep.subr.bf16.mxu0 0
    %323 = vmatpush1.bf16.msra.mxu0 %v261
    %324 = vmatprep.subr.bf16.mxu0 0
    %325 = vmatpush1.bf16.msra.mxu0 %v262
    %326 = vmatprep.subr.bf16.mxu0 0
    %327 = vmatpush1.bf16.msra.mxu0 %v263
    %328 = vmatprep.mubr.bf16.mxu0 %v102
    %329 = vmatmul.mubr.bf16.gmra.mrb[0].mxu0 %v101
    %v330 = vpop.f32.mrb[0].mxu0
    %v331 = vadd.f32 0.0, %v330
    %v332 = vpop.f32.mrb[0].mxu0
    %v333 = vpop.f32.mrb[0].mxu0
    %v334 = vadd.f32 0.0, %v333
    %v335 = vpop.f32.mrb[0].mxu0
    %336 = vdwg.mxu0
    %337 = vmatprep.subr.bf16.mxu0 0
    %338 = vmatpush1.bf16.msra.mxu0 %v264
    %339 = vmatprep.subr.bf16.mxu0 0
    %340 = vmatpush1.bf16.msra.mxu0 %v265
    %341 = vmatprep.subr.bf16.mxu0 0
    %342 = vmatpush1.bf16.msra.mxu0 %v266
    %343 = vmatprep.subr.bf16.mxu0 0
    %344 = vmatpush1.bf16.msra.mxu0 %v267
    %345 = vmatprep.subr.bf16.mxu0 0
    %346 = vmatpush1.bf16.msra.mxu0 %v268
    %347 = vmatprep.subr.bf16.mxu0 0
    %348 = vmatpush1.bf16.msra.mxu0 %v269
    %349 = vmatprep.subr.bf16.mxu0 0
    %350 = vmatpush1.bf16.msra.mxu0 %v270
    %351 = vmatprep.subr.bf16.mxu0 0
    %352 = vmatpush1.bf16.msra.mxu0 %v271
    %353 = vmatprep.subr.bf16.mxu0 0
    %354 = vmatpush1.bf16.msra.mxu0 0
    %355 = vmatprep.subr.bf16.mxu0 0
    %356 = vmatpush1.bf16.msra.mxu0 0
    %357 = vmatprep.subr.bf16.mxu0 0
    %358 = vmatpush1.bf16.msra.mxu0 0
    %359 = vmatprep.subr.bf16.mxu0 0
    %360 = vmatpush1.bf16.msra.mxu0 0
    %361 = vmatprep.subr.bf16.mxu0 0
    %362 = vmatpush1.bf16.msra.mxu0 0
    %363 = vmatprep.subr.bf16.mxu0 0
    %364 = vmatpush1.bf16.msra.mxu0 0
    %365 = vmatprep.subr.bf16.mxu0 0
    %366 = vmatpush1.bf16.msra.mxu0 0
    %367 = vmatprep.subr.bf16.mxu0 0
    %368 = vmatpush1.bf16.msra.mxu0 0
    %369 = vmatprep.mubr.bf16.mxu0 0
    %370 = vmatmul.mubr.bf16.gmra.mrb[0].mxu0 %v103
    %v371 = vpop.f32.mrb[0].mxu0
    %v372 = vadd.f32 %v331, %v371
    %v373 = vpop.f32.mrb[0].mxu0
    %v374 = vpop.f32.mrb[0].mxu0
    %v375 = vadd.f32 %v334, %v374
    %v376 = vpop.f32.mrb[0].mxu0
    %377 = vdwg.mxu0
    %v378 = vld [vmem:[%s3] sm:$0x1]
    %v379 = vlaneseq
    %v380 = vshrl.u32 %v379, 7
    %v381 = vsub.s32 0, %v380
    %v382 = vrot.slane %v378, %v381
    %v383 = vmul.f32 %v372, %v382
    %v384 = vmul.f32 %v375, %v382
    %v385 = vld [vmem:[%s3 + $0x1] sm:$0x1]
    %v386 = vlaneseq
    %v387 = vshrl.u32 %v386, 7
    %v388 = vsub.s32 0, %v387
    %v389 = vrot.slane %v385, %v388
    %v390 = vadd.f32 %v383, %v389
    %v391 = vadd.f32 %v384, %v389
    %v392 = vmax.f32 %v390, 0.0
    %v393 = vmax.f32 %v391, 0.0
    %v394 = vpack.c.bf16 %v393, %v392
    %v395 = vld [vmem:[#allocation3] sm:$0x1]
    %v396 = vsel %vm68, 0, %v395
    %397 = vst [vmem:[#allocation3] sm:$0x1] %v396
    %v399 = vshrl.u32 %v394, 16
    %v401 = vrot.slane %v399, 7
    %v402 = vshll.u32 %v394, 16
    %v404 = vor.u32 %v401, %v402
    %v406 = vld [vmem:[#allocation3] sm:$0xff]
    %v407 = vsel %vm82, %v404, %v406
    %408 = vst [vmem:[#allocation3] sm:$0xff] %v407
    %409 = vst [vmem:[#allocation3 + $0x8] sm:$0xff] %v394
    %v410 = vld [vmem:[#allocation3 + $0x10] sm:$0x80]
    %v411 = vsel %vm89, 0, %v410
    %412 = vst [vmem:[#allocation3 + $0x10] sm:$0x80] %v411
    %v413 = vrot.slane %v402, 1
    %v414 = vor.u32 %v399, %v413
    %v416 = vld [vmem:[#allocation3 + $0x10] sm:$0xff]
    %v417 = vsel %vm97, %v414, %v416
    %418 = vst [vmem:[#allocation3 + $0x10] sm:$0xff] %v417
    %v419 = vld [vmem:[#allocation3] sm:$0xff]
    %v420 = vld [vmem:[#allocation3 + $0x8] sm:$0xff]
    %v421 = vld [vmem:[#allocation3 + $0x10] sm:$0xff]
    %v422 = vld [vmem:[#allocation9] sm:$0xf]
    %v423 = vld [vmem:[#allocation9 + $0x4] sm:$0xf]
    %v424 = vld [vmem:[#allocation9 + $0x8] sm:$0xf]
    %v425 = vld [vmem:[#allocation9 + $0xc] sm:$0xf]
    %v426 = vld [vmem:[#allocation9 + $0x10] sm:$0xf]
    %v427 = vld [vmem:[#allocation9 + $0x14] sm:$0xf]
    %v428 = vld [vmem:[#allocation9 + $0x18] sm:$0xf]
    %v429 = vld [vmem:[#allocation9 + $0x1c] sm:$0xf]
    %v430 = vld [vmem:[#allocation9 + $0x20] sm:$0xf]
    %v431 = vld [vmem:[#allocation9 + $0x24] sm:$0xf]
    %v432 = vld [vmem:[#allocation9 + $0x28] sm:$0xf]
    %v433 = vld [vmem:[#allocation9 + $0x2c] sm:$0xf]
    %v434 = vld [vmem:[#allocation9 + $0x30] sm:$0xf]
    %v435 = vld [vmem:[#allocation9 + $0x34] sm:$0xf]
    %v436 = vld [vmem:[#allocation9 + $0x38] sm:$0xf]
    %v437 = vld [vmem:[#allocation9 + $0x3c] sm:$0xf]
    %v438 = vld [vmem:[#allocation9 + $0x40] sm:$0xf]
    %v439 = vld [vmem:[#allocation9 + $0x44] sm:$0xf]
    %v440 = vld [vmem:[#allocation9 + $0x48] sm:$0xf]
    %v441 = vld [vmem:[#allocation9 + $0x4c] sm:$0xf]
    %v442 = vld [vmem:[#allocation9 + $0x50] sm:$0xf]
    %v443 = vld [vmem:[#allocation9 + $0x54] sm:$0xf]
    %v444 = vld [vmem:[#allocation9 + $0x58] sm:$0xf]
    %v445 = vld [vmem:[#allocation9 + $0x5c] sm:$0xf]
    %v446 = vld [vmem:[#allocation9 + $0x60] sm:$0xf]
    %v447 = vld [vmem:[#allocation9 + $0x64] sm:$0xf]
    %v448 = vld [vmem:[#allocation9 + $0x68] sm:$0xf]
    %v449 = vld [vmem:[#allocation9 + $0x6c] sm:$0xf]
    %v450 = vld [vmem:[#allocation9 + $0x70] sm:$0xf]
    %v451 = vld [vmem:[#allocation9 + $0x74] sm:$0xf]
    %v452 = vld [vmem:[#allocation9 + $0x78] sm:$0xf]
    %v453 = vld [vmem:[#allocation9 + $0x7c] sm:$0xf]
    %v454 = vld [vmem:[#allocation9 + $0x80] sm:$0xf]
    %v455 = vld [vmem:[#allocation9 + $0x84] sm:$0xf]
    %v456 = vld [vmem:[#allocation9 + $0x88] sm:$0xf]
    %v457 = vld [vmem:[#allocation9 + $0x8c] sm:$0xf]
    %v458 = vld [vmem:[#allocation9 + $0x90] sm:$0xf]
    %v459 = vld [vmem:[#allocation9 + $0x94] sm:$0xf]
    %v460 = vld [vmem:[#allocation9 + $0x98] sm:$0xf]
    %v461 = vld [vmem:[#allocation9 + $0x9c] sm:$0xf]
    %v462 = vld [vmem:[#allocation9 + $0xa0] sm:$0xf]
    %v463 = vld [vmem:[#allocation9 + $0xa4] sm:$0xf]
    %v464 = vld [vmem:[#allocation9 + $0xa8] sm:$0xf]
    %v465 = vld [vmem:[#allocation9 + $0xac] sm:$0xf]
    %v466 = vld [vmem:[#allocation9 + $0xb0] sm:$0xf]
    %v467 = vld [vmem:[#allocation9 + $0xb4] sm:$0xf]
    %v468 = vld [vmem:[#allocation9 + $0xb8] sm:$0xf]
    %v469 = vld [vmem:[#allocation9 + $0xbc] sm:$0xf]
    %v518 = vunpack.c.l.b16 %v422
    %v519 = vunpack.c.l.b16 %v423
    %v520 = vunpack.c.l.b16 %v424
    %v521 = vunpack.c.l.b16 %v425
    %v522 = vunpack.c.l.b16 %v426
    %v523 = vunpack.c.l.b16 %v427
    %v524 = vunpack.c.l.b16 %v428
    %v525 = vunpack.c.l.b16 %v429
    %v526 = vunpack.c.l.b16 %v430
    %v527 = vunpack.c.l.b16 %v431
    %v528 = vunpack.c.l.b16 %v432
    %v529 = vunpack.c.l.b16 %v433
    %v530 = vunpack.c.l.b16 %v434
    %v531 = vunpack.c.l.b16 %v435
    %v532 = vunpack.c.l.b16 %v436
    %v533 = vunpack.c.l.b16 %v437
    %v534 = vunpack.c.l.b16 %v438
    %v535 = vunpack.c.l.b16 %v439
    %v536 = vunpack.c.l.b16 %v440
    %v537 = vunpack.c.l.b16 %v441
    %v538 = vunpack.c.l.b16 %v442
    %v539 = vunpack.c.l.b16 %v443
    %v540 = vunpack.c.l.b16 %v444
    %v541 = vunpack.c.l.b16 %v445
    %v542 = vunpack.c.l.b16 %v446
    %v543 = vunpack.c.l.b16 %v447
    %v544 = vunpack.c.l.b16 %v448
    %v545 = vunpack.c.l.b16 %v449
    %v546 = vunpack.c.l.b16 %v450
    %v547 = vunpack.c.l.b16 %v451
    %v548 = vunpack.c.l.b16 %v452
    %v549 = vunpack.c.l.b16 %v453
    %v550 = vunpack.c.l.b16 %v454
    %v551 = vunpack.c.l.b16 %v455
    %v552 = vunpack.c.l.b16 %v456
    %v553 = vunpack.c.l.b16 %v457
    %v554 = vunpack.c.l.b16 %v458
    %v555 = vunpack.c.l.b16 %v459
    %v556 = vunpack.c.l.b16 %v460
    %v557 = vunpack.c.l.b16 %v461
    %v558 = vunpack.c.l.b16 %v462
    %v559 = vunpack.c.l.b16 %v463
    %v560 = vunpack.c.l.b16 %v464
    %v561 = vunpack.c.l.b16 %v465
    %v562 = vunpack.c.l.b16 %v466
    %v563 = vunpack.c.l.b16 %v467
    %v564 = vunpack.c.l.b16 %v468
    %v565 = vunpack.c.l.b16 %v469
    %v566 = vpack.c.b16 %v519, %v518
    %v567 = vpack.c.b16 %v521, %v520
    %v568 = vpack.c.b16 %v523, %v522
    %v569 = vpack.c.b16 %v525, %v524
    %v570 = vpack.c.b16 %v527, %v526
    %v571 = vpack.c.b16 %v529, %v528
    %v572 = vpack.c.b16 %v531, %v530
    %v573 = vpack.c.b16 %v533, %v532
    %v574 = vpack.c.b16 %v535, %v534
    %v575 = vpack.c.b16 %v537, %v536
    %v576 = vpack.c.b16 %v539, %v538
    %v577 = vpack.c.b16 %v541, %v540
    %v578 = vpack.c.b16 %v543, %v542
    %v579 = vpack.c.b16 %v545, %v544
    %v580 = vpack.c.b16 %v547, %v546
    %v581 = vpack.c.b16 %v549, %v548
    %v582 = vpack.c.b16 %v551, %v550
    %v583 = vpack.c.b16 %v553, %v552
    %v584 = vpack.c.b16 %v555, %v554
    %v585 = vpack.c.b16 %v557, %v556
    %v586 = vpack.c.b16 %v559, %v558
    %v587 = vpack.c.b16 %v561, %v560
    %v588 = vpack.c.b16 %v563, %v562
    %v589 = vpack.c.b16 %v565, %v564
    %614 = vmatprep.subr.bf16.mxu0 0
    %615 = vmatpush1.bf16.msra.mxu0 %v566
    %616 = vmatprep.subr.bf16.mxu0 0
    %617 = vmatpush1.bf16.msra.mxu0 %v567
    %618 = vmatprep.subr.bf16.mxu0 0
    %619 = vmatpush1.bf16.msra.mxu0 %v568
    %620 = vmatprep.subr.bf16.mxu0 0
    %621 = vmatpush1.bf16.msra.mxu0 %v569
    %622 = vmatprep.subr.bf16.mxu0 0
    %623 = vmatpush1.bf16.msra.mxu0 %v570
    %624 = vmatprep.subr.bf16.mxu0 0
    %625 = vmatpush1.bf16.msra.mxu0 %v571
    %626 = vmatprep.subr.bf16.mxu0 0
    %627 = vmatpush1.bf16.msra.mxu0 %v572
    %628 = vmatprep.subr.bf16.mxu0 0
    %629 = vmatpush1.bf16.msra.mxu0 %v573
    %630 = vmatprep.subr.bf16.mxu0 0
    %631 = vmatpush1.bf16.msra.mxu0 %v574
    %632 = vmatprep.subr.bf16.mxu0 0
    %633 = vmatpush1.bf16.msra.mxu0 %v575
    %634 = vmatprep.subr.bf16.mxu0 0
    %635 = vmatpush1.bf16.msra.mxu0 %v576
    %636 = vmatprep.subr.bf16.mxu0 0
    %637 = vmatpush1.bf16.msra.mxu0 %v577
    %638 = vmatprep.subr.bf16.mxu0 0
    %639 = vmatpush1.bf16.msra.mxu0 %v578
    %640 = vmatprep.subr.bf16.mxu0 0
    %641 = vmatpush1.bf16.msra.mxu0 %v579
    %642 = vmatprep.subr.bf16.mxu0 0
    %643 = vmatpush1.bf16.msra.mxu0 %v580
    %644 = vmatprep.subr.bf16.mxu0 0
    %645 = vmatpush1.bf16.msra.mxu0 %v581
    %646 = vmatprep.mubr.bf16.mxu0 %v420
    %647 = vmatmul.mubr.bf16.gmra.mrb[0].mxu0 %v419
    %v648 = vpop.f32.mrb[0].mxu0
    %v649 = vadd.f32 0.0, %v648
    %v650 = vpop.f32.mrb[0].mxu0
    %v651 = vpop.f32.mrb[0].mxu0
    %v652 = vadd.f32 0.0, %v651
    %v653 = vpop.f32.mrb[0].mxu0
    %654 = vdwg.mxu0
    %655 = vmatprep.subr.bf16.mxu0 0
    %656 = vmatpush1.bf16.msra.mxu0 %v582
    %657 = vmatprep.subr.bf16.mxu0 0
    %658 = vmatpush1.bf16.msra.mxu0 %v583
    %659 = vmatprep.subr.bf16.mxu0 0
    %660 = vmatpush1.bf16.msra.mxu0 %v584
    %661 = vmatprep.subr.bf16.mxu0 0
    %662 = vmatpush1.bf16.msra.mxu0 %v585
    %663 = vmatprep.subr.bf16.mxu0 0
    %664 = vmatpush1.bf16.msra.mxu0 %v586
    %665 = vmatprep.subr.bf16.mxu0 0
    %666 = vmatpush1.bf16.msra.mxu0 %v587
    %667 = vmatprep.subr.bf16.mxu0 0
    %668 = vmatpush1.bf16.msra.mxu0 %v588
    %669 = vmatprep.subr.bf16.mxu0 0
    %670 = vmatpush1.bf16.msra.mxu0 %v589
    %671 = vmatprep.subr.bf16.mxu0 0
    %672 = vmatpush1.bf16.msra.mxu0 0
    %673 = vmatprep.subr.bf16.mxu0 0
    %674 = vmatpush1.bf16.msra.mxu0 0
    %675 = vmatprep.subr.bf16.mxu0 0
    %676 = vmatpush1.bf16.msra.mxu0 0
    %677 = vmatprep.subr.bf16.mxu0 0
    %678 = vmatpush1.bf16.msra.mxu0 0
    %679 = vmatprep.subr.bf16.mxu0 0
    %680 = vmatpush1.bf16.msra.mxu0 0
    %681 = vmatprep.subr.bf16.mxu0 0
    %682 = vmatpush1.bf16.msra.mxu0 0
    %683 = vmatprep.subr.bf16.mxu0 0
    %684 = vmatpush1.bf16.msra.mxu0 0
    %685 = vmatprep.subr.bf16.mxu0 0
    %686 = vmatpush1.bf16.msra.mxu0 0
    %687 = vmatprep.mubr.bf16.mxu0 0
    %688 = vmatmul.mubr.bf16.gmra.mrb[0].mxu0 %v421
    %v689 = vpop.f32.mrb[0].mxu0
    %v690 = vadd.f32 %v649, %v689
    %v691 = vpop.f32.mrb[0].mxu0
    %v692 = vpop.f32.mrb[0].mxu0
    %v693 = vadd.f32 %v652, %v692
    %v694 = vpop.f32.mrb[0].mxu0
    %695 = vdwg.mxu0
    %v696 = vld [vmem:[%s4] sm:$0x1]
    %v697 = vlaneseq
    %v698 = vshrl.u32 %v697, 7
    %v699 = vsub.s32 0, %v698
    %v700 = vrot.slane %v696, %v699
    %v701 = vmul.f32 %v690, %v700
    %v702 = vmul.f32 %v693, %v700
    %v703 = vld [vmem:[%s4 + $0x1] sm:$0x1]
    %v704 = vlaneseq
    %v705 = vshrl.u32 %v704, 7
    %v706 = vsub.s32 0, %v705
    %v707 = vrot.slane %v703, %v706
    %v708 = vadd.f32 %v701, %v707
    %v709 = vadd.f32 %v702, %v707
    %v710 = vadd.f32 %v708, %v63
    %v711 = vadd.f32 %v709, %v64
    %v712 = vmax.f32 %v710, 0.0
    %v713 = vmax.f32 %v711, 0.0
    %714 = vst [vmem:[#allocation10] sm:$0xff] %v712
    %715 = vst [vmem:[#allocation10 + $0x8] sm:$0xff] %v713
    // Predicated region
    $region34: #{tpu_custom_call.1} parent=1 // pred_check
      _
    $region35: #{tpu_custom_call.1} parent=1 // pred_check_branch
      %717 = sbr.rel (0) target = $region37
    $region36: #{tpu_custom_call.1} parent=1 // pred_region
      %s719 = ssub.s32 256, 256
      %720 = vsyncadd [#allocation6], %s719
      %s721 = sshll.u32 [#allocation10], 4
      %s722 = int_to_ptr.vmem [resolvable:$true] %s721
      %727 = dma.vmem_to_hbm [thread:$0]  %s722, 256, %s5, [#allocation6], 128, 128, 8
    $region37: #{tpu_custom_call.1} parent=1 // pred_fallthru
      _
    // Predicated region
    $region38: #{tpu_custom_call.1} parent=1 // pred_check
      _
    $region39: #{tpu_custom_call.1} parent=1 // pred_check_branch
      %729 = sbr.rel (0) target = $region41
    $region40: #{tpu_custom_call.1} parent=1 // pred_region
      %730 = dma.done [#allocation6], 256
    $region41: #{tpu_custom_call.1} parent=1 // pred_fallthru
      _
    %731 = vsyncpa [#allocation5], 1
    %732 = vsyncpa [#allocation8], 1
    %733 = vsyncpa [#allocation6], 1

</llo_original>
